<compile_context>
chip_gen: v7x
topology: tpu7x:2x2x1
jax: 0.10.0
libtpu: 0.0.40
codegen_flags: <defaults>
</compile_context>

<pallas_src>
import functools

import jax
import jax.numpy as jnp
from jax.experimental import pallas as pl
from jax.experimental.pallas import tpu as pltpu


# Per-block VMEM budget.  Counts input+output double-buffering *and* the
# in-kernel f32 working set (x, per-radix slabs, exps, products).
_VMEM_BLOCK_BUDGET = 4 * 1024 * 1024
# Raised scoped-VMEM limit (defaults: 16 MiB v5e, 32 MiB v6e/v7x).  32 MiB is
# safe on every generation and gives fallback full-extent blocks headroom.
_VMEM_LIMIT = 32 * 1024 * 1024
# Tensors bigger than this get >= 2 grid steps along a "parallel" axis so
# v7x's two TensorCores both get work.
_MEGACORE_SPLIT_BYTES = 1 << 20


# --------------------------------------------------------------------------
# Kernels
# --------------------------------------------------------------------------
def _rsoftmax_flat_kernel(x_ref, o_ref, *, radix, cardinality, rest):
    """Canonical (small / unaligned rest) path, batch packed on sublanes.

    x_ref: (TB, cardinality*radix*rest)  lane index = c*radix*rest + r*rest + k
    o_ref: (TB, radix*cardinality*rest)  lane index = r*cardinality*rest + c*rest + k

    The reorder is done on the loaded value with static lane slices (and a
    concatenate when cardinality > 1), so the output stores are wide
    (cardinality*rest lanes per radix) instead of `rest`-wide masked vst's.
    """
    x = x_ref[...].astype(jnp.float32)

    def gather(r):
        if cardinality == 1:
            return x[:, r * rest:(r + 1) * rest]
        return jnp.concatenate(
            [x[:, c * radix * rest + r * rest: c * radix * rest + (r + 1) * rest]
             for c in range(cardinality)],
            axis=-1)

    xs = [gather(r) for r in range(radix)]        # each (TB, cardinality*rest)
    m = xs[0]
    for v in xs[1:]:
        m = jnp.maximum(m, v)
    es = [jnp.exp(v - m) for v in xs]
    s = es[0]
    for v in es[1:]:
        s = s + v
    inv = pl.reciprocal(s, approx=True)           # EUP slot
    inv = inv * (2.0 - s * inv)                   # one Newton step -> ~f32 accuracy

    span = cardinality * rest
    for r in range(radix):
        o_ref[:, r * span:(r + 1) * span] = (es[r] * inv).astype(o_ref.dtype)


def _rsoftmax_spatial_kernel(x_ref, o_ref, *, radix, cardinality):
    """Lane-aligned (rest % 128 == 0) path with rest tiled on lanes.

    x_ref: (TB, cardinality*radix, TR)  sublane index = c*radix + r
    o_ref: (TB, radix*cardinality, TR)  sublane index = r*cardinality + c

    Every load slice and every store is a full-lane-width (TR) slab.
    """
    x = x_ref[...].astype(jnp.float32)
    for c in range(cardinality):
        xs = [x[:, c * radix + r, :] for r in range(radix)]   # each (TB, TR)
        m = xs[0]
        for v in xs[1:]:
            m = jnp.maximum(m, v)
        es = [jnp.exp(v - m) for v in xs]
        s = es[0]
        for v in es[1:]:
            s = s + v
        inv = pl.reciprocal(s, approx=True)
        inv = inv * (2.0 - s * inv)
        for r in range(radix):
            o_ref[:, r * cardinality + c, :] = (es[r] * inv).astype(o_ref.dtype)


def _sigmoid_kernel(x_ref, o_ref):
    o_ref[...] = jax.nn.sigmoid(x_ref[...].astype(jnp.float32)).astype(o_ref.dtype)


# --------------------------------------------------------------------------
# Tile pickers
# --------------------------------------------------------------------------
def _pick_flat_tiles(B, feat, itemsize):
    """Batch tile for the 2D (batch, feat) layout (batch on sublanes).

    Second-minor block dim must be a multiple of 8 or the full extent."""
    per_elem = 4 * itemsize + 16          # in/out double-buffered + f32 temps
    max_tb = max(1, _VMEM_BLOCK_BUDGET // max(1, per_elem * feat))
    if max_tb >= B:
        TB = B
        # v7x megacore: split large single-block cases across both cores.
        if B % 16 == 0 and B * feat * itemsize > _MEGACORE_SPLIT_BYTES:
            TB = B // 2
        return TB
    t = (min(max_tb, B) // 8) * 8
    while t >= 8:
        if B % t == 0:
            return t
        t -= 8
    # No 8-multiple divisor fits the budget: full extent (legal; the raised
    # vmem_limit_bytes gives it headroom).
    # TODO(synk): add padded rest-axis tiling for huge rows whose rest is not
    # 128-aligned (rare for SplAtConv2d shapes).
    return B


def _pick_spatial_tiles(B, group, rest, itemsize):
    """(batch, rest) tiles for the 3D (batch, cardinality*radix, rest) layout."""
    per_elem = 4 * itemsize + 12          # in/out double-buffered + f32 temps
    max_elems = max(1, _VMEM_BLOCK_BUDGET // per_elem)
    tr_cap = max(128, (max_elems // max(1, group)) // 128 * 128)
    TR = rest
    if TR > tr_cap:
        TR = tr_cap
        while rest % TR:                  # rest % 128 == 0 -> terminates >= 128
            TR -= 128
    max_tb = max(1, max_elems // (group * TR))
    TB = min(B, max_tb)
    while B % TB:
        TB -= 1
    # v7x megacore: guarantee >= 2 grid steps for non-tiny tensors.
    if TB == B and TR == rest and B * group * rest * itemsize > _MEGACORE_SPLIT_BYTES:
        if rest >= 256 and (rest // 2) % 128 == 0:
            TR = rest // 2
        elif B % 2 == 0:
            TB = B // 2
    return TB, TR


def _pick_sigmoid_tiles(B, N, itemsize):
    per_elem = 4 * itemsize + 4           # in/out double-buffered + f32 temp
    TN = N
    if N % 128 == 0:
        tn_cap = max(128,
                     (_VMEM_BLOCK_BUDGET // (per_elem * min(B, 8))) // 128 * 128)
        if N > tn_cap:
            TN = tn_cap
            while N % TN:
                TN -= 128
    max_tb = max(1, _VMEM_BLOCK_BUDGET // max(1, per_elem * TN))
    if max_tb >= B:
        TB = B
        if B % 16 == 0 and B * N * itemsize > _MEGACORE_SPLIT_BYTES:
            TB = B // 2
        return TB, TN
    t = (min(max_tb, B) // 8) * 8
    while t >= 8:
        if B % t == 0:
            return t, TN
        t -= 8
    return B, TN                          # second-minor must be 8k or full extent


# --------------------------------------------------------------------------
# Wrapper
# --------------------------------------------------------------------------
def rsoftmax(x, radix, cardinality):
    """Pallas TPU equivalent of rSoftMax.forward (x is NCHW, like PyTorch)."""
    batch = x.shape[0]
    dtype = x.dtype
    itemsize = jnp.dtype(dtype).itemsize
    feat = 1
    for d in x.shape[1:]:
        feat *= d

    if radix > 1:
        group = cardinality * radix
        assert feat % group == 0, (
            f"rSoftMax: feature size {feat} is not divisible by "
            f"cardinality*radix = {cardinality}*{radix}")
        rest = feat // group

        if rest % 128 == 0:
            # Spatial / lane-aligned path: rest tiled in 128-lane multiples.
            xr = x.reshape(batch, group, rest)
            TB, TR = _pick_spatial_tiles(batch, group, rest, itemsize)
            kernel = functools.partial(_rsoftmax_spatial_kernel,
                                       radix=radix, cardinality=cardinality)
            out = pl.pallas_call(
                kernel,
                out_shape=jax.ShapeDtypeStruct((batch, group, rest), dtype),
                grid=(batch // TB, rest // TR),
                in_specs=[pl.BlockSpec((TB, group, TR), lambda b, t: (b, 0, t))],
                out_specs=pl.BlockSpec((TB, group, TR), lambda b, t: (b, 0, t)),
                compiler_params=pltpu.CompilerParams(
                    dimension_semantics=("parallel", "parallel"),
                    vmem_limit_bytes=_VMEM_LIMIT),
            )(xr)
            return out.reshape(batch, -1)

        # Canonical attention-logits path (small / unaligned rest): 2D layout,
        # batch on sublanes, whole radix*cardinality*rest row per block.
        x2 = x.reshape(batch, feat)
        TB = _pick_flat_tiles(batch, feat, itemsize)
        kernel = functools.partial(_rsoftmax_flat_kernel,
                                   radix=radix, cardinality=cardinality, rest=rest)
        out = pl.pallas_call(
            kernel,
            out_shape=jax.ShapeDtypeStruct((batch, feat), dtype),
            grid=(batch // TB,),
            in_specs=[pl.BlockSpec((TB, feat), lambda b: (b, 0))],
            out_specs=pl.BlockSpec((TB, feat), lambda b: (b, 0)),
            compiler_params=pltpu.CompilerParams(
                dimension_semantics=("parallel",),
                vmem_limit_bytes=_VMEM_LIMIT),
        )(x2)
        return out.reshape(batch, -1)

    # radix == 1: elementwise sigmoid, original NCHW shape preserved.
    orig_shape = x.shape
    x2 = x.reshape(batch, -1)
    B, N = x2.shape
    TB, TN = _pick_sigmoid_tiles(B, N, itemsize)
    out = pl.pallas_call(
        _sigmoid_kernel,
        out_shape=jax.ShapeDtypeStruct((B, N), dtype),
        grid=(B // TB, N // TN),
        in_specs=[pl.BlockSpec((TB, TN), lambda i, j: (i, j))],
        out_specs=pl.BlockSpec((TB, TN), lambda i, j: (i, j)),
        compiler_params=pltpu.CompilerParams(
            dimension_semantics=("parallel", "parallel"),
            vmem_limit_bytes=_VMEM_LIMIT),
    )(x2)
    return out.reshape(orig_shape)


# --------------------------------------------------------------------------
# Reference + self-test
# --------------------------------------------------------------------------
def _reference_rsoftmax(x, radix, cardinality):
    batch = x.shape[0]
    if radix > 1:
        xr = x.reshape(batch, cardinality, radix, -1)
        xr = jnp.transpose(xr, (0, 2, 1, 3))
        xr = jax.nn.softmax(xr, axis=1)
        return xr.reshape(batch, -1)
    return jax.nn.sigmoid(x)


def _check(x, radix, cardinality, atol, rtol):
    out = jax.block_until_ready(rsoftmax(x, radix, cardinality))
    ref = _reference_rsoftmax(x, radix, cardinality)
    assert out.shape == ref.shape, (out.shape, ref.shape)
    err = float(jnp.max(jnp.abs(out.astype(jnp.float32) - ref.astype(jnp.float32))))
    assert err <= atol + rtol, err


if __name__ == "__main__":
    key = jax.random.PRNGKey(0)
    k0, k1, k2, k3, k4, k5 = jax.random.split(key, 6)

    # 1) Canonical SplAtConv2d attention logits: (B, channels*radix, 1, 1),
    #    cardinality > 1  -> flat path with in-register (c,r) reorder.
    x0 = jax.random.normal(k0, (2, 32, 1, 1), dtype=jnp.float32)
    _check(x0, radix=2, cardinality=4, atol=1e-4, rtol=1e-4)

    # 2) ResNeSt default config (cardinality=1), larger batch packed on
    #    sublanes -> flat path, no concatenation.
    x1 = jax.random.normal(k1, (16, 64, 1, 1), dtype=jnp.float32)
    _check(x1, radix=2, cardinality=1, atol=1e-4, rtol=1e-4)

    # 3) Small spatial input with unaligned rest -> flat path.
    x2 = jax.random.normal(k2, (2, 16, 4, 4), dtype=jnp.float32)
    _check(x2, radix=2, cardinality=2, atol=1e-4, rtol=1e-4)

    # 4) Spatial input with rest % 128 == 0 -> lane-aligned spatial path.
    x3 = jax.random.normal(k3, (2, 8, 16, 16), dtype=jnp.float32)
    _check(x3, radix=2, cardinality=2, atol=1e-4, rtol=1e-4)

    # 5) radix=4, cardinality=1 spatial -> spatial path, wider softmax group.
    x4 = jax.random.normal(k4, (2, 16, 16, 16), dtype=jnp.float32)
    _check(x4, radix=4, cardinality=1, atol=1e-4, rtol=1e-4)

    # 6) radix == 1 path (sigmoid, original NCHW shape preserved).
    x5 = jax.random.normal(k5, (2, 8, 4, 4), dtype=jnp.float32)
    _check(x5, radix=1, cardinality=4, atol=1e-5, rtol=1e-5)

    print("KERNEL_OK")
</pallas_src>

<mosaic_0001>
module attributes {stable_mosaic.version = 11 : i64} {
  func.func @_rsoftmax_flat_kernel(%arg0: i32, %arg1: memref<2x32xf32, #tpu.memory_space<vmem>>, %arg2: memref<2x32xf32, #tpu.memory_space<vmem>>) attributes {dimension_semantics = [#tpu.dimension_semantics<parallel>], iteration_bounds = array<i64: 1>, scalar_prefetch = 0 : i64, scratch_operands = 0 : i64, tpu.core_type = #tpu.core_type<tc>, window_params = [{transform_indices = @transform_0, window_bounds = array<i64: 2, 32>}, {transform_indices = @transform_1, window_bounds = array<i64: 2, 32>}]} {
    %c0 = arith.constant 0 : index
    %c0_0 = arith.constant 0 : index
    %0 = vector.load %arg1[%c0, %c0_0] : memref<2x32xf32, #tpu.memory_space<vmem>>, vector<2x32xf32>
    %1 = vector.extract_strided_slice %0 {offsets = [0, 0], sizes = [2, 4], strides = [1, 1]} : vector<2x32xf32> to vector<2x4xf32>
    %2 = vector.extract_strided_slice %0 {offsets = [0, 8], sizes = [2, 4], strides = [1, 1]} : vector<2x32xf32> to vector<2x4xf32>
    %3 = vector.extract_strided_slice %0 {offsets = [0, 16], sizes = [2, 4], strides = [1, 1]} : vector<2x32xf32> to vector<2x4xf32>
    %4 = vector.extract_strided_slice %0 {offsets = [0, 24], sizes = [2, 4], strides = [1, 1]} : vector<2x32xf32> to vector<2x4xf32>
    %5 = tpu.concatenate %1, %2, %3, %4 in 1 : vector<2x4xf32>, vector<2x4xf32>, vector<2x4xf32>, vector<2x4xf32> -> vector<2x16xf32>
    %6 = vector.extract_strided_slice %0 {offsets = [0, 4], sizes = [2, 4], strides = [1, 1]} : vector<2x32xf32> to vector<2x4xf32>
    %7 = vector.extract_strided_slice %0 {offsets = [0, 12], sizes = [2, 4], strides = [1, 1]} : vector<2x32xf32> to vector<2x4xf32>
    %8 = vector.extract_strided_slice %0 {offsets = [0, 20], sizes = [2, 4], strides = [1, 1]} : vector<2x32xf32> to vector<2x4xf32>
    %9 = vector.extract_strided_slice %0 {offsets = [0, 28], sizes = [2, 4], strides = [1, 1]} : vector<2x32xf32> to vector<2x4xf32>
    %10 = tpu.concatenate %6, %7, %8, %9 in 1 : vector<2x4xf32>, vector<2x4xf32>, vector<2x4xf32>, vector<2x4xf32> -> vector<2x16xf32>
    %11 = arith.maximumf %5, %10 : vector<2x16xf32>
    %12 = arith.subf %5, %11 : vector<2x16xf32>
    %13 = math.exp %12 : vector<2x16xf32>
    %14 = arith.subf %10, %11 : vector<2x16xf32>
    %15 = math.exp %14 : vector<2x16xf32>
    %16 = arith.addf %13, %15 : vector<2x16xf32>
    %17 = tpu.reciprocal %16 {approx = true} : vector<2x16xf32> -> vector<2x16xf32>
    %18 = arith.mulf %16, %17 : vector<2x16xf32>
    %cst = arith.constant 2.000000e+00 : f32
    %19 = vector.broadcast %cst : f32 to vector<2x16xf32>
    %20 = arith.subf %19, %18 : vector<2x16xf32>
    %21 = arith.mulf %17, %20 : vector<2x16xf32>
    %22 = arith.mulf %13, %21 : vector<2x16xf32>
    %c0_1 = arith.constant 0 : index
    %c0_2 = arith.constant 0 : index
    %23 = vector.load %arg2[%c0_1, %c0_2] : memref<2x32xf32, #tpu.memory_space<vmem>>, vector<2x16xf32>
    tpu.vector_store %arg2[%c0_1, %c0_2], %22 {strides = array<i32>} : memref<2x32xf32, #tpu.memory_space<vmem>>, vector<2x16xf32>,
    %24 = arith.mulf %15, %21 : vector<2x16xf32>
    %c0_3 = arith.constant 0 : index
    %c16 = arith.constant 16 : index
    %25 = vector.load %arg2[%c0_3, %c16] : memref<2x32xf32, #tpu.memory_space<vmem>>, vector<2x16xf32>
    tpu.vector_store %arg2[%c0_3, %c16], %24 {strides = array<i32>} : memref<2x32xf32, #tpu.memory_space<vmem>>, vector<2x16xf32>,
    return
  }
  func.func @transform_0(%arg0: i32) -> (i32, i32) {
    %c0_i32 = arith.constant 0 : i32
    %c0_i32_0 = arith.constant 0 : i32
    return %arg0, %c0_i32 : i32, i32
  }
  func.func @transform_1(%arg0: i32) -> (i32, i32) {
    %c0_i32 = arith.constant 0 : i32
    %c0_i32_0 = arith.constant 0 : i32
    return %arg0, %c0_i32 : i32, i32
  }
}

</mosaic_0001>

<llo_original>
// kernel: tpu_custom_call.1
$region0: #{tpu_custom_call.1}
  #allocation0 [shape = 'u32[]', space=smem, size = 0x4, offset = 0x4, fixed_abs, tag = 'smem constant byte address 0x4 - core index']
  #allocation1 [shape = 'u32[144,128]{1,0:T(1,128)}', space=vmem, size = 0x12000, scoped, tag = 'internal scratch']
  %s0 = inlined_call_operand.hbm [shape: f32[2,32], index: 0, kind: input, shape index: {}]
  %s1 = inlined_call_operand.hbm [shape: f32[2,32], index: 1, kind: output, shape index: {}]
  %s2 = sld [smem:[#allocation0]]
  $region18: #{tpu_custom_call.1} parent=0
    _
  %s4 = ssub.s32 1, %s2
  %s5 = scalar_select 0, %s4, %s2
  $region1: #{tpu_custom_call.1} parent=0
    #allocation2 [shape = 'u8[1024]{0}', space=vmem, size = 0x400, scoped, tag = 'input window, operand 0, single buffered']
    #allocation3 [shape = 's32[1]{0}', space=sflag, size = 0x4, scoped, tag = 'scoped memory for tpu_custom_call.1']
    #allocation4 [shape = 's32[1]{0}', space=sflag, size = 0x4, scoped, tag = 'scoped memory for tpu_custom_call.1']
    #allocation5 [shape = 'u8[1024]{0}', space=vmem, size = 0x400, scoped, tag = 'output window, operand 0, single buffered']
    %6 = vsyncpa [#allocation3], 0
    %7 = vsyncpa [#allocation4], 0
    // Predicated region
    $region2: #{tpu_custom_call.1} parent=1 // pred_check
      _
    $region3: #{tpu_custom_call.1} parent=1 // pred_check_branch
      %9 = sbr.rel (0) target = $region5
    $region4: #{tpu_custom_call.1} parent=1 // pred_region
      %s11 = ssub.s32 32, 32
      %12 = vsyncadd [#allocation3], %s11
      %s14 = sshll.u32 [#allocation2], 4
      %s15 = int_to_ptr.vmem [resolvable:$true] %s14
      %17 = dma.hbm_to_vmem [thread:$0]  %s0, 32, %s15, [#allocation3]
    $region5: #{tpu_custom_call.1} parent=1 // pred_fallthru
      _
    // Predicated region
    $region6: #{tpu_custom_call.1} parent=1 // pred_check
      _
    $region7: #{tpu_custom_call.1} parent=1 // pred_check_branch
      %19 = sbr.rel (0) target = $region9
    $region8: #{tpu_custom_call.1} parent=1 // pred_region
      %20 = dma.done [#allocation3], 32
    $region9: #{tpu_custom_call.1} parent=1 // pred_fallthru
      _
    %v21 = vld [vmem:[#allocation2] sm:$0x3]
    %23 = vrot.lane.b32.xlu0 %v21, 124
    %v24 = vpop.permute.xlu0 %23
    %26 = vrot.lane.b32.xlu0 %v21, 120
    %v27 = vpop.permute.xlu0 %26
    %29 = vrot.lane.b32.xlu0 %v21, 116
    %v30 = vpop.permute.xlu0 %29
    %vm32 = vcmask 31744
    %v33 = vsel %vm32, %v21, %v24
    %vm34 = vcmask 64512
    %v35 = vsel %vm34, %v33, %v27
    %vm36 = vcmask 97280
    %v37 = vsel %vm36, %v35, %v30
    %38 = vrot.lane.b32.xlu0 %v21, 112
    %v39 = vpop.permute.xlu0 %38
    %v41 = vsel %vm32, %v24, %v27
    %v42 = vsel %vm34, %v41, %v30
    %v43 = vsel %vm36, %v42, %v39
    %v44 = vmax.f32 %v37, %v43
    %v45 = vsub.f32 %v37, %v44
    %v46 = vmul.f32 %v45, 1.442695
    %v47 = vpow.pop %v46
    %v48 = vsub.f32 %v43, %v44
    %v49 = vmul.f32 %v48, 1.442695
    %v50 = vpow.pop %v49
    %v51 = vadd.f32 %v47, %v50
    %v52 = vrcp.pop %v51
    %v53 = vmul.f32 %v51, %v52
    %v54 = vsub.f32 2.0, %v53
    %v55 = vmul.f32 %v52, %v54
    %v56 = vmul.f32 %v47, %v55
    %vm57 = vcmask 123904
    %58 = vst.msk [vmem:[#allocation5] sm:$0x3] %vm57, %v56
    %v59 = vmul.f32 %v50, %v55
    %61 = vrot.lane.b32.xlu0 %v59, 16
    %v62 = vpop.permute.xlu0 %61
    %vm64 = vcmask 255104
    %65 = vst.msk [vmem:[#allocation5] sm:$0x3] %vm64, %v62
    // Predicated region
    $region10: #{tpu_custom_call.1} parent=1 // pred_check
      _
    $region11: #{tpu_custom_call.1} parent=1 // pred_check_branch
      %67 = sbr.rel (0) target = $region13
    $region12: #{tpu_custom_call.1} parent=1 // pred_region
      %s69 = ssub.s32 32, 32
      %70 = vsyncadd [#allocation4], %s69
      %s72 = sshll.u32 [#allocation5], 4
      %s73 = int_to_ptr.vmem [resolvable:$true] %s72
      %75 = dma.vmem_to_hbm [thread:$0]  %s73, 32, %s1, [#allocation4]
    $region13: #{tpu_custom_call.1} parent=1 // pred_fallthru
      _
    // Predicated region
    $region14: #{tpu_custom_call.1} parent=1 // pred_check
      _
    $region15: #{tpu_custom_call.1} parent=1 // pred_check_branch
      %77 = sbr.rel (0) target = $region17
    $region16: #{tpu_custom_call.1} parent=1 // pred_region
      %78 = dma.done [#allocation4], 32
    $region17: #{tpu_custom_call.1} parent=1 // pred_fallthru
      _
    %79 = vsyncpa [#allocation3], 1
    %80 = vsyncpa [#allocation4], 1

</llo_original>
